<compile_context>
chip_gen: v6e
topology: v6e:2x2x1
jax: 0.10.0
libtpu: 0.0.40
codegen_flags: <defaults>
</compile_context>

<pallas_src>
import functools

import jax
import jax.numpy as jnp
from jax.experimental import pallas as pl
from jax.experimental.pallas import tpu as pltpu


def detect_kernel(x_ref, w_ref, c_ref, o_ref, *, tl, w_img):
    # 1x1 conv == channel-major matmul on the MXU:
    #   W (Cout_p, Cin) @ X (Cin, TL)  ->  (Cout_p, TL), f32 accumulation.
    xb = x_ref[...].astype(jnp.bfloat16)                     # cast in VMEM, not HBM
    t = jnp.dot(w_ref[...], xb, preferred_element_type=jnp.float32)

    c = c_ref[...]                                           # (Cout_p, 8) packed constants
    t = t + c[:, 0:1]                                        # col 0: bias

    # Numerically safe exp/sigmoid pair (review fix): em underflows exactly
    # where exp(t) overflows, so ex saturates like the reference exp.
    em = jnp.exp(-t)
    sig = pl.reciprocal(1.0 + em, approx=True)               # sigmoid(t)
    ex = pl.reciprocal(em, approx=True)                      # exp(t)

    # Per-pixel grid coordinates along the lane axis (pixel = y*W + x).
    # Float path with +0.5 guard; exact for H*W < 2^24 (true for YOLO maps).
    pix = (jax.lax.broadcasted_iota(jnp.int32, (1, tl), 1)
           + pl.program_id(1) * tl).astype(jnp.float32)
    gy = jnp.floor((pix + 0.5) * (1.0 / w_img))              # pixel row (y)
    gx = pix - gy * w_img                                    # pixel col (x)

    grid_add = gx * c[:, 1:2] + gy * c[:, 2:3]               # nonzero only on x/y rows
    # col 3: wh mask; col 4: combined scale (stride on xy, anchor on wh, 1 else)
    dec = jnp.where(c[:, 3:4] > 0.0, ex, sig + grid_add) * c[:, 4:5]
    o_ref[...] = dec


def _round_up(v, m):
    return (v + m - 1) // m * m


def _vmem_params():
    """(tile budget, vmem_limit_bytes), generation aware (v7x only has 64 MiB)."""
    cap = 0
    try:
        cap = int(pltpu.get_tpu_info().vmem_capacity_bytes)
    except Exception:
        pass
    if cap >= 100 * 1024 * 1024:                 # v5e / v6e: 128 MiB physical
        return 44 * 1024 * 1024, 80 * 1024 * 1024
    return 22 * 1024 * 1024, 40 * 1024 * 1024    # v7x (64 MiB) or unknown: stay safe


def _pick_lane_tile(hw, cin, cout_p, budget_bytes):
    """Largest lane tile along H*W that fits the VMEM budget.

    The tile must be a multiple of 128 that divides H*W, or the full H*W
    extent (allowed by the (8,128) rule when it equals the array dim)."""
    def est(tl):
        x_b = cin * tl * 4 * 2             # f32 activation block, double-buffered
        o_b = cout_p * tl * 4 * 2          # f32 output block, double-buffered
        w_b = cout_p * cin * 2 * 2         # bf16 weight (+ pipeline buffer)
        c_b = cout_p * 8 * 4 * 2           # packed constants
        tmp = 6 * cout_p * tl * 4 + cin * tl * 2   # epilogue temps + bf16 cast
        return x_b + o_b + w_b + c_b + tmp

    if hw % 128 != 0:
        # Small / odd map: take the whole row extent as one block per image.
        return hw
    tl = 2048
    while tl > 128 and (tl > hw or est(tl) > budget_bytes):
        tl //= 2
    while hw % tl != 0 and tl > 128:       # keep the grid exact (no ragged block)
        tl //= 2
    return min(tl, hw)


def detect_level(x_nchw, w, b, anchors_l, stride, na, no):
    """One detection level: 1x1 conv + yolov3 decode, fused in Pallas."""
    B, Cin, H, W = x_nchw.shape
    Cout = na * no
    HW = H * W

    cout_p = _round_up(Cout, 8)            # sublane axis: f32 needs x8 only
    budget, vmem_limit = _vmem_params()
    TL = _pick_lane_tile(HW, Cin, cout_p, budget)

    # Free reshape: NCHW is already channel-major (B, Cin, H*W). No transpose,
    # no pad, no dtype-cast HBM pass on the activations.
    x3 = x_nchw.reshape(B, Cin, HW)

    # Weight (Cout, Cin, 1, 1) -> (Cout_p, Cin) bf16 (tiny; negligible HBM cost).
    w2d = jnp.pad(w.reshape(Cout, Cin).astype(jnp.float32),
                  ((0, cout_p - Cout), (0, 0))).astype(jnp.bfloat16)

    # Per-output-channel constants, channel c = a*no + k, packed as
    # (Cout_p, 8): [bias, sel_x, sel_y, wh_mask, comb_scale, 0, 0, 0].
    f32 = jnp.float32
    kk = jnp.arange(Cout) % no
    aa = jnp.arange(Cout) // no
    bias = b.reshape(Cout).astype(f32)
    selx = (kk == 0).astype(f32)
    sely = (kk == 1).astype(f32)
    mwh = ((kk >= 2) & (kk < 4)).astype(f32)
    anch = jnp.where(kk == 2, anchors_l[aa, 0],
                     jnp.where(kk == 3, anchors_l[aa, 1], 1.0)).astype(f32)
    comb = jnp.where(kk < 2, jnp.float32(stride), anch)   # stride | anchor | 1
    zeros = jnp.zeros((Cout,), f32)
    consts = jnp.stack([bias, selx, sely, mwh, comb, zeros, zeros, zeros], axis=1)
    consts = jnp.pad(consts, ((0, cout_p - Cout), (0, 0)))

    grid = (B, HW // TL)
    cost = pl.CostEstimate(
        flops=2 * B * HW * Cin * cout_p,
        transcendentals=3 * B * HW * cout_p,
        bytes_accessed=(B * HW * Cin * 4 + cout_p * Cin * 2
                        + cout_p * 8 * 4 + B * HW * cout_p * 4),
    )

    out = pl.pallas_call(
        functools.partial(detect_kernel, tl=TL, w_img=W),
        out_shape=jax.ShapeDtypeStruct((B, cout_p, HW), jnp.float32),
        grid=grid,
        in_specs=[
            pl.BlockSpec((None, Cin, TL), lambda bb, t: (bb, 0, t)),   # activations
            pl.BlockSpec((cout_p, Cin), lambda bb, t: (0, 0)),         # weight (resident)
            pl.BlockSpec((cout_p, 8), lambda bb, t: (0, 0)),           # packed constants
        ],
        out_specs=pl.BlockSpec((None, cout_p, TL), lambda bb, t: (bb, 0, t)),
        compiler_params=pltpu.CompilerParams(
            dimension_semantics=("parallel", "parallel"),
            vmem_limit_bytes=vmem_limit),
        cost_estimate=cost,
    )(x3, w2d, consts)

    if cout_p != Cout:
        out = out[:, :Cout, :]

    # (B, na*no, H*W) is exactly the torch conv-output layout; apply the same
    # view + permute the torch module does (single XLA transpose), then both
    # returned tensors are free reshapes of it.
    y5 = out.reshape(B, na, no, H, W).transpose(0, 1, 3, 4, 2)   # (B, na, H, W, no)
    z = y5.reshape(B, na * H * W, no)
    return y5, z


def detect_forward(xs, weights, biases, anchors, strides, na, no):
    """Inference path of Detect.forward (version='yolov3', training=False).

    Returns (cat(z, axis=1), x_decoded_list); the PyTorch code decodes x[i]
    in place, so the second element also holds decoded values.
    """
    x_dec, zs = [], []
    for i in range(len(xs)):
        y5, z = detect_level(xs[i], weights[i], biases[i],
                             anchors[i], strides[i], na, no)
        x_dec.append(y5)
        zs.append(z)
    return jnp.concatenate(zs, axis=1), x_dec


def _reference_level(x_nchw, w, b, anchors_l, stride, na, no):
    """Pure-JAX f32 reference for a sanity check."""
    B, Cin, H, W = x_nchw.shape
    Cout = na * no
    t = jnp.einsum('bchw,oc->bohw', x_nchw.astype(jnp.float32),
                   w.reshape(Cout, Cin)) + b.reshape(1, Cout, 1, 1)
    t = t.reshape(B, na, no, H, W).transpose(0, 1, 3, 4, 2)  # (B,na,H,W,no)
    yy, xx = jnp.meshgrid(jnp.arange(H, dtype=jnp.float32),
                          jnp.arange(W, dtype=jnp.float32), indexing='ij')
    grid = jnp.stack((xx, yy), -1).reshape(1, 1, H, W, 2)
    xy = (jax.nn.sigmoid(t[..., 0:2]) + grid) * stride
    wh = jnp.exp(t[..., 2:4]) * anchors_l.reshape(1, na, 1, 1, 2)
    rest = jax.nn.sigmoid(t[..., 4:])
    y = jnp.concatenate([xy, wh, rest], axis=-1)
    return y, y.reshape(B, na * H * W, no)


if __name__ == "__main__":
    # Small synthetic Detect: nc=3 classes, dim=5 -> no=8, 3 anchors per level,
    # 2 levels with ch=(16, 32), batch=2, spatial 16x16 and 8x8, strides 8/16.
    nc, dim = 3, 5
    no = nc + dim
    anchors_cfg = [[10., 13., 16., 30., 33., 23.],
                   [30., 61., 62., 45., 59., 119.]]
    nl = len(anchors_cfg)
    na = len(anchors_cfg[0]) // 2
    anchors = jnp.asarray(anchors_cfg, dtype=jnp.float32).reshape(nl, na, 2)
    ch = (16, 32)
    strides = [8.0, 16.0]
    spatial = [(16, 16), (8, 8)]
    B = 2

    key = jax.random.PRNGKey(0)
    xs, weights, biases = [], [], []
    for i in range(nl):
        key, kx, kw, kb = jax.random.split(key, 4)
        H, W = spatial[i]
        xs.append(jax.random.normal(kx, (B, ch[i], H, W), dtype=jnp.float32))
        weights.append(0.05 * jax.random.normal(kw, (na * no, ch[i], 1, 1),
                                                dtype=jnp.float32))
        biases.append(0.05 * jax.random.normal(kb, (na * no,), dtype=jnp.float32))

    z_cat, x_dec = detect_forward(xs, weights, biases, anchors, strides, na, no)
    jax.block_until_ready(z_cat)
    jax.block_until_ready(x_dec)

    # Sanity check against a pure-JAX f32 reference (tolerance widened for the
    # bf16 MXU path and the approx-reciprocal EUP ops).
    refs_z = []
    for i in range(nl):
        ry, rz = _reference_level(xs[i], weights[i], biases[i],
                                  anchors[i], strides[i], na, no)
        refs_z.append(rz)
        assert jnp.allclose(x_dec[i], ry, rtol=2e-2, atol=2e-2)
    assert jnp.allclose(z_cat, jnp.concatenate(refs_z, axis=1),
                        rtol=2e-2, atol=2e-2)

    assert z_cat.shape == (B, sum(na * h * w for h, w in spatial), no)
    print("KERNEL_OK")
</pallas_src>

<mosaic_0001>
module attributes {stable_mosaic.version = 11 : i64} {
  func.func @detect_kernel(%arg0: i32, %arg1: i32, %arg2: memref<1x16x256xf32, #tpu.memory_space<vmem>>, %arg3: memref<24x16xbf16, #tpu.memory_space<vmem>>, %arg4: memref<24x8xf32, #tpu.memory_space<vmem>>, %arg5: memref<1x24x256xf32, #tpu.memory_space<vmem>>) attributes {dimension_semantics = [#tpu.dimension_semantics<parallel>, #tpu.dimension_semantics<parallel>], iteration_bounds = array<i64: 2, 1>, scalar_prefetch = 0 : i64, scratch_operands = 0 : i64, tpu.core_type = #tpu.core_type<tc>, window_params = [{transform_indices = @transform_0, window_bounds = array<i64: 1, 16, 256>}, {pipeline_mode = #tpu.pipeline_mode<synchronous>, transform_indices = @transform_1, window_bounds = array<i64: 24, 16>}, {pipeline_mode = #tpu.pipeline_mode<synchronous>, transform_indices = @transform_2, window_bounds = array<i64: 24, 8>}, {transform_indices = @transform_3, window_bounds = array<i64: 1, 24, 256>}]} {
    %c0 = arith.constant 0 : index
    %c0_0 = arith.constant 0 : index
    %c0_1 = arith.constant 0 : index
    %0 = vector.load %arg2[%c0, %c0_0, %c0_1] : memref<1x16x256xf32, #tpu.memory_space<vmem>>, vector<1x16x256xf32>
    %1 = vector.shape_cast %0 : vector<1x16x256xf32> to vector<16x256xf32>
    %2 = arith.truncf %1 : vector<16x256xf32> to vector<16x256xbf16>
    %c0_2 = arith.constant 0 : index
    %c0_3 = arith.constant 0 : index
    %3 = vector.load %arg3[%c0_2, %c0_3] : memref<24x16xbf16, #tpu.memory_space<vmem>>, vector<24x16xbf16>
    %cst = arith.constant dense<0.000000e+00> : vector<24x256xf32>
    %4 = tpu.matmul %3, %2, %cst {dimension_numbers = #tpu.dot_dimension_numbers<[1], [0], [0], [1], [0, 0, 1, 1], [], []>} : vector<24x16xbf16>, vector<16x256xbf16>, vector<24x256xf32> -> vector<24x256xf32>
    %c0_4 = arith.constant 0 : index
    %c0_5 = arith.constant 0 : index
    %5 = vector.load %arg4[%c0_4, %c0_5] : memref<24x8xf32, #tpu.memory_space<vmem>>, vector<24x8xf32>
    %6 = vector.extract_strided_slice %5 {offsets = [0, 0], sizes = [24, 1], strides = [1, 1]} : vector<24x8xf32> to vector<24x1xf32>
    %7 = vector.broadcast %6 : vector<24x1xf32> to vector<24x256xf32>
    %8 = arith.addf %4, %7 : vector<24x256xf32>
    %cst_6 = arith.constant 0.000000e+00 : f32
    %9 = vector.broadcast %cst_6 : f32 to vector<24x256xf32>
    %10 = arith.subf %9, %8 : vector<24x256xf32>
    %11 = math.exp %10 : vector<24x256xf32>
    %cst_7 = arith.constant 1.000000e+00 : f32
    %12 = vector.broadcast %cst_7 : f32 to vector<24x256xf32>
    %13 = arith.addf %12, %11 : vector<24x256xf32>
    %14 = tpu.reciprocal %13 {approx = true} : vector<24x256xf32> -> vector<24x256xf32>
    %15 = tpu.reciprocal %11 {approx = true} : vector<24x256xf32> -> vector<24x256xf32>
    %16 = tpu.iota {dimensions = array<i32: 1>} : vector<1x256xi32>
    %c256_i32 = arith.constant 256 : i32
    %17 = arith.muli %arg1, %c256_i32 : i32
    %18 = vector.broadcast %17 : i32 to vector<1x256xi32>
    %19 = arith.addi %16, %18 : vector<1x256xi32>
    %20 = arith.sitofp %19 : vector<1x256xi32> to vector<1x256xf32>
    %cst_8 = arith.constant 5.000000e-01 : f32
    %21 = vector.broadcast %cst_8 : f32 to vector<1x256xf32>
    %22 = arith.addf %20, %21 : vector<1x256xf32>
    %cst_9 = arith.constant 6.250000e-02 : f32
    %23 = vector.broadcast %cst_9 : f32 to vector<1x256xf32>
    %24 = arith.mulf %22, %23 : vector<1x256xf32>
    %25 = math.floor %24 : vector<1x256xf32>
    %cst_10 = arith.constant 1.600000e+01 : f32
    %26 = vector.broadcast %cst_10 : f32 to vector<1x256xf32>
    %27 = arith.mulf %25, %26 : vector<1x256xf32>
    %28 = arith.subf %20, %27 : vector<1x256xf32>
    %29 = vector.extract_strided_slice %5 {offsets = [0, 1], sizes = [24, 1], strides = [1, 1]} : vector<24x8xf32> to vector<24x1xf32>
    %30 = vector.broadcast %28 : vector<1x256xf32> to vector<24x256xf32>
    %31 = vector.broadcast %29 : vector<24x1xf32> to vector<24x256xf32>
    %32 = arith.mulf %30, %31 : vector<24x256xf32>
    %33 = vector.extract_strided_slice %5 {offsets = [0, 2], sizes = [24, 1], strides = [1, 1]} : vector<24x8xf32> to vector<24x1xf32>
    %34 = vector.broadcast %25 : vector<1x256xf32> to vector<24x256xf32>
    %35 = vector.broadcast %33 : vector<24x1xf32> to vector<24x256xf32>
    %36 = arith.mulf %34, %35 : vector<24x256xf32>
    %37 = arith.addf %32, %36 : vector<24x256xf32>
    %38 = vector.extract_strided_slice %5 {offsets = [0, 3], sizes = [24, 1], strides = [1, 1]} : vector<24x8xf32> to vector<24x1xf32>
    %cst_11 = arith.constant 0.000000e+00 : f32
    %39 = vector.broadcast %cst_11 : f32 to vector<24x1xf32>
    %40 = arith.cmpf ogt, %38, %39 : vector<24x1xf32>
    %41 = arith.addf %14, %37 : vector<24x256xf32>
    %42 = vector.shape_cast %40 : vector<24x1xi1> to vector<24x1xi1>
    %43 = vector.broadcast %42 : vector<24x1xi1> to vector<24x256xi1>
    %44 = arith.select %43, %15, %41 : vector<24x256xi1>, vector<24x256xf32>
    %45 = vector.extract_strided_slice %5 {offsets = [0, 4], sizes = [24, 1], strides = [1, 1]} : vector<24x8xf32> to vector<24x1xf32>
    %46 = vector.broadcast %45 : vector<24x1xf32> to vector<24x256xf32>
    %47 = arith.mulf %44, %46 : vector<24x256xf32>
    %c0_12 = arith.constant 0 : index
    %c0_13 = arith.constant 0 : index
    %c0_14 = arith.constant 0 : index
    %48 = vector.load %arg5[%c0_12, %c0_13, %c0_14] : memref<1x24x256xf32, #tpu.memory_space<vmem>>, vector<1x24x256xf32>
    %49 = vector.shape_cast %48 : vector<1x24x256xf32> to vector<24x256xf32>
    %50 = vector.shape_cast %47 : vector<24x256xf32> to vector<1x24x256xf32>
    tpu.vector_store %arg5[%c0_12, %c0_13, %c0_14], %50 {strides = array<i32>} : memref<1x24x256xf32, #tpu.memory_space<vmem>>, vector<1x24x256xf32>,
    return
  }
  func.func @transform_0(%arg0: i32, %arg1: i32) -> (i32, i32, i32) {
    %c0_i32 = arith.constant 0 : i32
    %c0_i32_0 = arith.constant 0 : i32
    return %arg0, %c0_i32, %arg1 : i32, i32, i32
  }
  func.func @transform_1(%arg0: i32, %arg1: i32) -> (i32, i32) {
    %c0_i32 = arith.constant 0 : i32
    %c0_i32_0 = arith.constant 0 : i32
    %c0_i32_1 = arith.constant 0 : i32
    return %c0_i32, %c0_i32_0 : i32, i32
  }
  func.func @transform_2(%arg0: i32, %arg1: i32) -> (i32, i32) {
    %c0_i32 = arith.constant 0 : i32
    %c0_i32_0 = arith.constant 0 : i32
    %c0_i32_1 = arith.constant 0 : i32
    return %c0_i32, %c0_i32_0 : i32, i32
  }
  func.func @transform_3(%arg0: i32, %arg1: i32) -> (i32, i32, i32) {
    %c0_i32 = arith.constant 0 : i32
    %c0_i32_0 = arith.constant 0 : i32
    return %arg0, %c0_i32, %arg1 : i32, i32, i32
  }
}

</mosaic_0001>

<llo_original>
// kernel: tpu_custom_call.1
$region0: #{tpu_custom_call.1}
  #allocation0 [shape = 'u32[]', space=smem, size = 0x4, offset = 0x4, fixed_abs, tag = 'smem constant byte address 0x4 - core index']
  #allocation1 [shape = 'u32[144,128]{1,0:T(1,128)}', space=vmem, size = 0x12000, scoped, tag = 'internal scratch']
  %s0 = inlined_call_operand.hbm [shape: f32[2,16,256], index: 0, kind: input, shape index: {}]
  %s1 = inlined_call_operand.vmem [shape: bf16[24,16], index: 1, kind: input, shape index: {}]
  %s2 = inlined_call_operand.vmem [shape: f32[24,8], index: 2, kind: input, shape index: {}]
  %s3 = inlined_call_operand.hbm [shape: f32[2,24,256], index: 3, kind: output, shape index: {}]
  %s4 = sld [smem:[#allocation0]]
  $region49: #{tpu_custom_call.1} parent=0
    _
  %s6 = ssub.s32 1, %s4
  %s7 = scalar_select 0, %s6, %s4
  $region1: #{tpu_custom_call.1} parent=0
    #allocation2 [shape = 'u8[32768]{0}', space=vmem, size = 0x8000, scoped, tag = 'input window, operand 0']
    #allocation3 [shape = 's32[2]{0}', space=sflag, size = 0x8, scoped, tag = 'scoped memory for tpu_custom_call.1']
    #allocation4 [shape = 's32[2]{0}', space=sflag, size = 0x8, scoped, tag = 'scoped memory for tpu_custom_call.1']
    #allocation5 [shape = 'u8[49152]{0}', space=vmem, size = 0xc000, scoped, tag = 'output window, operand 0']
    %8 = vsyncpa [#allocation3], 0
    %s9 = scalar_lea.sflag [#allocation3], 1
    %10 = vsyncpa %s9, 0
    %11 = vsyncpa [#allocation4], 0
    %s12 = scalar_lea.sflag [#allocation4], 1
    %13 = vsyncpa %s12, 0
    loop: start=0, step=1, limit=4
    $region2: #{tpu_custom_call.1} parent=1 // loop_pre_header
      _
    $region3: #{tpu_custom_call.1} parent=1 // loop_header
      %s15 = sphi 0, %s19
      %p16 = scmp.ge.s32.totalorder %s15, 4
      %s22 = sphi 0, %s34
      %s23 = sphi 0, %s30
      %s24 = sphi 0, %s22
      %s25 = sphi 0, %s23
      %s26 = sphi 0, %s24
      %s27 = sphi 0, %s25
      %s39 = sphi 0, %s41
      %s42 = sphi 0, %s39
      %s43 = sphi 0, %s42
      %s59 = sphi 0, %s43
      %s63 = sphi 0, %s63
      %s65 = sphi 0, %s63
      %s66 = sphi 0, %s65
      %s80 = sphi 0, %s66
      %s84 = sphi 0, %s84
      %s86 = sphi 0, %s84
      %s87 = sphi 0, %s86
      %s101 = sphi 0, %s87
      %s109 = sphi 0, %s111
      %s112 = sphi 0, %s109
      %s113 = sphi 0, %s112
      %s129 = sphi 0, %s113
    $region4: #{tpu_custom_call.1} parent=1 // loop_header_branch
      %18 = sbr.rel (%p16) target = $region8
    $region5: #{tpu_custom_call.1} parent=1 // loop_body
      %s20 = ssub.s32 %s15, 1
      %s21 = ssub.s32 %s15, 2
      %s28 = sadd.s32 1, %s23
      %p29 = scmp.ge.s32.totalorder %s28, 1
      %s30 = scalar_select %p29, 0, %s28
      %s31 = sadd.s32 1, %s22
      %s32 = scalar_select %p29, %s31, %s22
      %p33 = scmp.ge.s32.totalorder %s32, 2
      %s34 = scalar_select %p33, 0, %s32
      %s35 = ssub.s32 %s22, %s34
      %s36 = ssub.s32 %s23, %s30
      %s37 = sor.u32 %s35, %s36
      %p38 = scmp.eq.s32.totalorder %s37, 0
      %s40 = sadd.s32 %s39, 1
      %s41 = scalar_select %p38, %s39, %s40
      %p44 = pneg %p38
      %p45 = scmp.eq.s32.totalorder %s15, 1
      %p46 = por %p44, %p45
      %p47 = scmp.ne.s32.totalorder %s39, %s42
      %p48 = scmp.eq.s32.totalorder %s15, 0
      %p49 = por %p47, %p48
      %p50 = scmp.ne.s32.totalorder %s39, %s42
      %p51 = scmp.eq.s32.totalorder %s20, 1
      %p52 = por %p50, %p51
      %p53 = scmp.ne.s32.totalorder %s42, %s43
      %p54 = scmp.eq.s32.totalorder %s20, 0
      %p55 = por %p53, %p54
      %p56 = scmp.ne.s32.totalorder %s42, %s43
      %p57 = scmp.eq.s32.totalorder %s21, 1
      %p58 = por %p56, %p57
      %p60 = scmp.ne.s32.totalorder %s43, %s59
      %p61 = scmp.eq.s32.totalorder %s21, 0
      %p62 = por %p60, %p61
      %s64 = sadd.s32 %s63, 1
      %p67 = scmp.eq.s32.totalorder %s15, 1
      %p68 = scmp.ne.s32.totalorder %s63, %s65
      %p69 = scmp.eq.s32.totalorder %s15, 0
      %p70 = por %p68, %p69
      %p71 = scmp.ne.s32.totalorder %s63, %s65
      %p72 = scmp.eq.s32.totalorder %s20, 1
      %p73 = por %p71, %p72
      %p74 = scmp.ne.s32.totalorder %s65, %s66
      %p75 = scmp.eq.s32.totalorder %s20, 0
      %p76 = por %p74, %p75
      %p77 = scmp.ne.s32.totalorder %s65, %s66
      %p78 = scmp.eq.s32.totalorder %s21, 1
      %p79 = por %p77, %p78
      %p81 = scmp.ne.s32.totalorder %s66, %s80
      %p82 = scmp.eq.s32.totalorder %s21, 0
      %p83 = por %p81, %p82
      %s85 = sadd.s32 %s84, 1
      %p88 = scmp.eq.s32.totalorder %s15, 1
      %p89 = scmp.ne.s32.totalorder %s84, %s86
      %p90 = scmp.eq.s32.totalorder %s15, 0
      %p91 = por %p89, %p90
      %p92 = scmp.ne.s32.totalorder %s84, %s86
      %p93 = scmp.eq.s32.totalorder %s20, 1
      %p94 = por %p92, %p93
      %p95 = scmp.ne.s32.totalorder %s86, %s87
      %p96 = scmp.eq.s32.totalorder %s20, 0
      %p97 = por %p95, %p96
      %p98 = scmp.ne.s32.totalorder %s86, %s87
      %p99 = scmp.eq.s32.totalorder %s21, 1
      %p100 = por %p98, %p99
      %p102 = scmp.ne.s32.totalorder %s87, %s101
      %p103 = scmp.eq.s32.totalorder %s21, 0
      %p104 = por %p102, %p103
      %s105 = ssub.s32 %s22, %s34
      %s106 = ssub.s32 %s23, %s30
      %s107 = sor.u32 %s105, %s106
      %p108 = scmp.eq.s32.totalorder %s107, 0
      %s110 = sadd.s32 %s109, 1
      %s111 = scalar_select %p108, %s109, %s110
      %p114 = pneg %p108
      %p115 = scmp.eq.s32.totalorder %s15, 1
      %p116 = por %p114, %p115
      %p117 = scmp.ne.s32.totalorder %s109, %s112
      %p118 = scmp.eq.s32.totalorder %s15, 0
      %p119 = por %p117, %p118
      %p120 = scmp.ne.s32.totalorder %s109, %s112
      %p121 = scmp.eq.s32.totalorder %s20, 1
      %p122 = por %p120, %p121
      %p123 = scmp.ne.s32.totalorder %s112, %s113
      %p124 = scmp.eq.s32.totalorder %s20, 0
      %p125 = por %p123, %p124
      %p126 = scmp.ne.s32.totalorder %s112, %s113
      %p127 = scmp.eq.s32.totalorder %s21, 1
      %p128 = por %p126, %p127
      %p130 = scmp.ne.s32.totalorder %s113, %s129
      %p131 = scmp.eq.s32.totalorder %s21, 0
      %p132 = por %p130, %p131
      %p133 = scmp.le.s32.totalorder 1, %s15
      %p134 = scmp.lt.s32.totalorder %s15, 3
      %p135 = pnand %p133, %p134
      %p136 = pneg %p135
      // Predicated region
      $region9: #{tpu_custom_call.1} parent=5 // pred_check
        _
      $region10: #{tpu_custom_call.1} parent=5 // pred_check_branch
        %138 = sbr.rel (%p135) target = $region12
      $region11: #{tpu_custom_call.1} parent=5 // pred_region
        %s139 = ssub.s32 %s15, 1
        // Predicated region
        $region13: #{tpu_custom_call.1} parent=11 // pred_check
          %p140 = pneg %p76
        $region14: #{tpu_custom_call.1} parent=11 // pred_check_branch
          %142 = sbr.rel (%p140) target = $region16
        $region15: #{tpu_custom_call.1} parent=11 // pred_region
          _
        $region16: #{tpu_custom_call.1} parent=11 // pred_fallthru
          _
        // Predicated region
        $region17: #{tpu_custom_call.1} parent=11 // pred_check
          %p143 = pneg %p97
        $region18: #{tpu_custom_call.1} parent=11 // pred_check_branch
          %145 = sbr.rel (%p143) target = $region20
        $region19: #{tpu_custom_call.1} parent=11 // pred_region
          _
        $region20: #{tpu_custom_call.1} parent=11 // pred_fallthru
          _
      $region12: #{tpu_custom_call.1} parent=5 // pred_fallthru
        _
      %p146 = scmp.lt.s32.totalorder %s15, 2
      // Predicated region
      $region21: #{tpu_custom_call.1} parent=5 // pred_check
        %p147 = pneg %p146
      $region22: #{tpu_custom_call.1} parent=5 // pred_check_branch
        %149 = sbr.rel (%p147) target = $region24
      $region23: #{tpu_custom_call.1} parent=5 // pred_region
        // Predicated region
        $region25: #{tpu_custom_call.1} parent=23 // pred_check
          %p150 = pneg %p49
        $region26: #{tpu_custom_call.1} parent=23 // pred_check_branch
          %152 = sbr.rel (%p150) target = $region28
        $region27: #{tpu_custom_call.1} parent=23 // pred_region
          %s153 = sand.u32 %s39, 1
          %s154 = scalar_lea.sflag [#allocation3], %s153
          %s155 = sand.u32 %s39, 1
          %s156 = smul.addr %s155, 32
          %s157 = scalar_lea.vmem [#allocation2], %s156
          %s158 = smul.u32 2, %s23
          %s160 = ssub.s32 512, 512
          %161 = vsyncadd %s154, %s160
          %s162 = smul.addr %s22, 4
          %s163 = sadd.s32 %s158, %s162
          %s164 = smul.addr %s163, 128
          %s165 = scalar_lea.hbm %s0, %s164
          %s166 = sshll.u32 %s157, 4
          %s167 = int_to_ptr.vmem [resolvable:$true] %s166
          %172 = dma.hbm_to_vmem [thread:$0]  %s165, 512, %s167, %s154, 256, 256, 16
        $region28: #{tpu_custom_call.1} parent=23 // pred_fallthru
          _
      $region24: #{tpu_custom_call.1} parent=5 // pred_fallthru
        _
      %p173 = scmp.le.s32.totalorder 1, %s15
      %p174 = scmp.lt.s32.totalorder %s15, 3
      %p175 = pnand %p173, %p174
      %p176 = pneg %p175
      // Predicated region
      $region29: #{tpu_custom_call.1} parent=5 // pred_check
        _
      $region30: #{tpu_custom_call.1} parent=5 // pred_check_branch
        %178 = sbr.rel (%p175) target = $region32
      $region31: #{tpu_custom_call.1} parent=5 // pred_region
        %s179 = ssub.s32 %s15, 1
        %s180 = sand.u32 %s42, 1
        %s181 = scalar_lea.sflag [#allocation3], %s180
        %s182 = sand.u32 %s42, 1
        %s183 = smul.addr %s182, 32
        %s184 = scalar_lea.vmem [#allocation2], %s183
        // Predicated region
        $region33: #{tpu_custom_call.1} parent=31 // pred_check
          %p185 = pneg %p55
        $region34: #{tpu_custom_call.1} parent=31 // pred_check_branch
          %187 = sbr.rel (%p185) target = $region36
        $region35: #{tpu_custom_call.1} parent=31 // pred_region
          %188 = dma.done %s181, 512
        $region36: #{tpu_custom_call.1} parent=31 // pred_fallthru
          _
        %s189 = sand.u32 %s42, 1
        %s190 = scalar_lea.sflag [#allocation3], %s189
        %s191 = sand.u32 %s42, 1
        %s192 = smul.addr %s191, 32
        %s193 = scalar_lea.vmem [#allocation2], %s192
        %p194 = pneg %p55
        %p195 = pneg %p52
        %p196 = pneg %p76
        %p197 = pneg %p73
        %p198 = pneg %p97
        %p199 = pneg %p94
        %p200 = pneg %p125
        %p201 = pneg %p122
        %s202 = sand.u32 %s112, 1
        %s203 = scalar_lea.sflag [#allocation4], %s202
        %s204 = sand.u32 %s112, 1
        %s205 = smul.addr %s204, 48
        %s206 = scalar_lea.vmem [#allocation5], %s205
        %s207 = smul.u32 2, %s25
        %s208 = smul.u32 2, %s25
        %v210 = vld [vmem:[%s184] sm:$0xff]
        %v211 = vld [vmem:[%s184 + $0x8] sm:$0xff]
        %v212 = vld [vmem:[%s184 + $0x10] sm:$0xff]
        %v213 = vld [vmem:[%s184 + $0x18] sm:$0xff]
        %v214 = vpack.c.bf16 %v212, %v210
        %v215 = vpack.c.bf16 %v213, %v211
        %v216 = vld [vmem:[%s1] sm:$0xf]
        %v217 = vld [vmem:[%s1 + $0x4] sm:$0xf]
        %v218 = vld [vmem:[%s1 + $0x8] sm:$0xf]
        %v219 = vld [vmem:[%s2] sm:$0xff]
        %v220 = vld [vmem:[%s2 + $0x8] sm:$0xff]
        %v221 = vld [vmem:[%s2 + $0x10] sm:$0xff]
        %223 = vset.pattern.permute.xlu0 0
        %224 = vperm.xlu0 %223, %v219
        %v225 = vpop.permute.xlu0 %224
        %228 = vset.pattern.permute.xlu0 0
        %229 = vperm.xlu0 %228, %v220
        %v230 = vpop.permute.xlu0 %229
        %233 = vset.pattern.permute.xlu0 0
        %234 = vperm.xlu0 %233, %v221
        %v235 = vpop.permute.xlu0 %234
        %v240 = vunpack.c.l.b16 %v216
        %v241 = vunpack.c.l.b16 %v217
        %v242 = vunpack.c.l.b16 %v218
        %v243 = vpack.c.b16 %v241, %v240
        %v244 = vpack.c.b16 %v242, %v242
        %vm245 = vcmask 130048
        %v247 = vsel %vm245, %v243, 0
        %v250 = vsel %vm245, %v244, 0
        %252 = vmatprep.subr.bf16.mxu0 0
        %253 = vmatpush1.bf16.msra.mxu0 0
        %254 = vmatprep.subr.bf16.mxu0 0
        %255 = vmatpush1.bf16.msra.mxu0 0
        %256 = vmatprep.subr.bf16.mxu0 0
        %257 = vmatpush1.bf16.msra.mxu0 0
        %258 = vmatprep.subr.bf16.mxu0 0
        %259 = vmatpush1.bf16.msra.mxu0 0
        %260 = vmatprep.subr.bf16.mxu0 0
        %261 = vmatpush1.bf16.msra.mxu0 0
        %262 = vmatprep.subr.bf16.mxu0 0
        %263 = vmatpush1.bf16.msra.mxu0 0
        %264 = vmatprep.subr.bf16.mxu0 0
        %265 = vmatpush1.bf16.msra.mxu0 0
        %266 = vmatprep.subr.bf16.mxu0 %v215
        %267 = vmatpush1.bf16.msra.mxu0 %v214
        %268 = vmatprep.subr.bf16.mxu0 0
        %269 = vmatpush2.bf16.msra.mxu0 0
        %270 = vmatprep.subr.bf16.mxu0 0
        %271 = vmatpush2.bf16.msra.mxu0 0
        %272 = vmatprep.subr.bf16.mxu0 0
        %273 = vmatpush2.bf16.msra.mxu0 0
        %274 = vmatprep.subr.bf16.mxu0 0
        %275 = vmatpush2.bf16.msra.mxu0 0
        %276 = vmatprep.subr.bf16.mxu0 0
        %277 = vmatpush2.bf16.msra.mxu0 0
        %278 = vmatprep.subr.bf16.mxu0 0
        %279 = vmatpush2.bf16.msra.mxu0 0
        %280 = vmatprep.subr.bf16.mxu0 0
        %281 = vmatpush2.bf16.msra.mxu0 0
        %282 = vmatprep.subr.bf16.mxu0 0
        %283 = vmatpush2.bf16.msra.mxu0 0
        %284 = vmatprep.mubr.bf16.mxu0 0
        %285 = vmatmul.mubr.bf16.gmra.mxu0 %v247
        %v286 = vpop.f32.mrf.mxu0
        %v287 = vadd.f32 %v225, %v286
        %v288 = vpop.f32.mrf.mxu0
        %v289 = vadd.f32 %v225, %v288
        %v290 = vpop.f32.mrf.mxu0
        %v291 = vadd.f32 %v230, %v290
        %v292 = vpop.f32.mrf.mxu0
        %v293 = vadd.f32 %v230, %v292
        %294 = vmatprep.mubr.bf16.mxu0 0
        %295 = vmatmul.mubr.bf16.gmra.mxu0 %v250
        %v296 = vpop.f32.mrf.mxu0
        %v297 = vadd.f32 %v235, %v296
        %v298 = vpop.f32.mrf.mxu0
        %v299 = vadd.f32 %v235, %v298
        %v300 = vpop.f32.mrf.mxu0
        %v301 = vpop.f32.mrf.mxu0
        %302 = vdwg.mxu0
        %v303 = vsub.f32 0.0, %v287
        %v304 = vsub.f32 0.0, %v289
        %v305 = vsub.f32 0.0, %v291
        %v306 = vsub.f32 0.0, %v293
        %v307 = vsub.f32 0.0, %v297
        %v308 = vsub.f32 0.0, %v299
        %v309 = vmul.f32 %v303, 1.442695
        %v310 = vpow.pop %v309
        %v311 = vmul.f32 %v304, 1.442695
        %v312 = vpow.pop %v311
        %v313 = vmul.f32 %v305, 1.442695
        %v314 = vpow.pop %v313
        %v315 = vmul.f32 %v306, 1.442695
        %v316 = vpow.pop %v315
        %v317 = vmul.f32 %v307, 1.442695
        %v318 = vpow.pop %v317
        %v319 = vmul.f32 %v308, 1.442695
        %v320 = vpow.pop %v319
        %v321 = vadd.f32 %v310, 1.0
        %v322 = vadd.f32 %v312, 1.0
        %v323 = vadd.f32 %v314, 1.0
        %v324 = vadd.f32 %v316, 1.0
        %v325 = vadd.f32 %v318, 1.0
        %v326 = vadd.f32 %v320, 1.0
        %v327 = vrcp.pop %v321
        %v328 = vrcp.pop %v322
        %v329 = vrcp.pop %v323
        %v330 = vrcp.pop %v324
        %v331 = vrcp.pop %v325
        %v332 = vrcp.pop %v326
        %v333 = vrcp.pop %v310
        %v334 = vrcp.pop %v312
        %v335 = vrcp.pop %v314
        %v336 = vrcp.pop %v316
        %v337 = vrcp.pop %v318
        %v338 = vrcp.pop %v320
        %v339 = vlaneseq
        %v340 = vand.u32 %v339, 127
        %v341 = vadd.s32 %v340, 128
        %s342 = smul.u32 %s25, 256
        %v343 = vstv %s342
        %v344 = vadd.s32 %v340, %v343
        %v345 = vadd.s32 %v341, %v343
        %v346 = vcvt.s32.f32 %v344
        %v347 = vcvt.s32.f32 %v345
        %v348 = vadd.f32 %v346, 0.5
        %v349 = vadd.f32 %v347, 0.5
        %v350 = vmul.f32 %v348, 0.0625
        %v351 = vmul.f32 %v349, 0.0625
        %v352 = vfloor.f32 %v350
        %v353 = vfloor.f32 %v351
        %v354 = vmul.f32 %v352, 16.0
        %v355 = vmul.f32 %v353, 16.0
        %v356 = vsub.f32 %v346, %v354
        %v357 = vsub.f32 %v347, %v355
        %358 = vset.pattern.permute.xlu0 1
        %359 = vperm.xlu0 %358, %v219
        %v360 = vpop.permute.xlu0 %359
        %362 = vset.pattern.permute.xlu0 1
        %363 = vperm.xlu0 %362, %v220
        %v364 = vpop.permute.xlu0 %363
        %366 = vset.pattern.permute.xlu0 1
        %367 = vperm.xlu0 %366, %v221
        %v368 = vpop.permute.xlu0 %367
        %v370 = vmul.f32 %v356, %v360
        %v371 = vmul.f32 %v357, %v360
        %v372 = vmul.f32 %v356, %v364
        %v373 = vmul.f32 %v357, %v364
        %v374 = vmul.f32 %v356, %v368
        %v375 = vmul.f32 %v357, %v368
        %376 = vset.pattern.permute.xlu0 2
        %377 = vperm.xlu0 %376, %v219
        %v378 = vpop.permute.xlu0 %377
        %380 = vset.pattern.permute.xlu0 2
        %381 = vperm.xlu0 %380, %v220
        %v382 = vpop.permute.xlu0 %381
        %384 = vset.pattern.permute.xlu0 2
        %385 = vperm.xlu0 %384, %v221
        %v386 = vpop.permute.xlu0 %385
        %v388 = vmul.f32 %v352, %v378
        %v389 = vmul.f32 %v353, %v378
        %v390 = vmul.f32 %v352, %v382
        %v391 = vmul.f32 %v353, %v382
        %v392 = vmul.f32 %v352, %v386
        %v393 = vmul.f32 %v353, %v386
        %v394 = vadd.f32 %v370, %v388
        %v395 = vadd.f32 %v371, %v389
        %v396 = vadd.f32 %v372, %v390
        %v397 = vadd.f32 %v373, %v391
        %v398 = vadd.f32 %v374, %v392
        %v399 = vadd.f32 %v375, %v393
        %vm400 = vcmp.gt.f32.partialorder %v219, 0.0
        %vm401 = vcmp.gt.f32.partialorder %v220, 0.0
        %vm402 = vcmp.gt.f32.partialorder %v221, 0.0
        %v403 = vadd.f32 %v327, %v394
        %v404 = vadd.f32 %v328, %v395
        %v405 = vadd.f32 %v329, %v396
        %v406 = vadd.f32 %v330, %v397
        %v407 = vadd.f32 %v331, %v398
        %v408 = vadd.f32 %v332, %v399
        %v409 = vsel %vm400, 1, 0
        %v410 = vsel %vm401, 1, 0
        %v411 = vsel %vm402, 1, 0
        %412 = vset.pattern.permute.xlu0 3
        %413 = vperm.xlu0 %412, %v409
        %v414 = vpop.permute.xlu0 %413
        %415 = vset.pattern.permute.xlu0 3
        %416 = vperm.xlu0 %415, %v410
        %v417 = vpop.permute.xlu0 %416
        %418 = vset.pattern.permute.xlu0 3
        %419 = vperm.xlu0 %418, %v411
        %v420 = vpop.permute.xlu0 %419
        %vm421 = vcmp.eq.s32.totalorder %v414, 1
        %vm422 = vcmp.eq.s32.totalorder %v417, 1
        %vm423 = vcmp.eq.s32.totalorder %v420, 1
        %v424 = vsel %vm421, %v333, %v403
        %v425 = vsel %vm421, %v334, %v404
        %v426 = vsel %vm422, %v335, %v405
        %v427 = vsel %vm422, %v336, %v406
        %v428 = vsel %vm423, %v337, %v407
        %v429 = vsel %vm423, %v338, %v408
        %430 = vset.pattern.permute.xlu0 4
        %431 = vperm.xlu0 %430, %v219
        %v432 = vpop.permute.xlu0 %431
        %434 = vset.pattern.permute.xlu0 4
        %435 = vperm.xlu0 %434, %v220
        %v436 = vpop.permute.xlu0 %435
        %438 = vset.pattern.permute.xlu0 4
        %439 = vperm.xlu0 %438, %v221
        %v440 = vpop.permute.xlu0 %439
        %v442 = vmul.f32 %v424, %v432
        %v443 = vmul.f32 %v425, %v432
        %v444 = vmul.f32 %v426, %v436
        %v445 = vmul.f32 %v427, %v436
        %v446 = vmul.f32 %v428, %v440
        %v447 = vmul.f32 %v429, %v440
        %448 = vst [vmem:[%s206] sm:$0xff] %v442
        %449 = vst [vmem:[%s206 + $0x8] sm:$0xff] %v443
        %450 = vst [vmem:[%s206 + $0x10] sm:$0xff] %v444
        %451 = vst [vmem:[%s206 + $0x18] sm:$0xff] %v445
        %452 = vst [vmem:[%s206 + $0x20] sm:$0xff] %v446
        %453 = vst [vmem:[%s206 + $0x28] sm:$0xff] %v447
        %s454 = sand.u32 %s112, 1
        %s455 = scalar_lea.sflag [#allocation4], %s454
        %s456 = sand.u32 %s112, 1
        %s457 = smul.addr %s456, 48
        %s458 = scalar_lea.vmem [#allocation5], %s457
        // Predicated region
        $region37: #{tpu_custom_call.1} parent=31 // pred_check
          %p459 = pneg %p122
        $region38: #{tpu_custom_call.1} parent=31 // pred_check_branch
          %461 = sbr.rel (%p459) target = $region40
        $region39: #{tpu_custom_call.1} parent=31 // pred_region
          %s462 = smul.u32 2, %s25
          %s464 = ssub.s32 768, 768
          %465 = vsyncadd %s455, %s464
          %s466 = smul.addr %s24, 6
          %s467 = sadd.s32 %s462, %s466
          %s468 = smul.addr %s467, 128
          %s469 = scalar_lea.hbm %s3, %s468
          %s470 = sshll.u32 %s458, 4
          %s471 = int_to_ptr.vmem [resolvable:$true] %s470
          %476 = dma.vmem_to_hbm [thread:$0]  %s471, 768, %s469, %s455, 256, 256, 16
        $region40: #{tpu_custom_call.1} parent=31 // pred_fallthru
          _
      $region32: #{tpu_custom_call.1} parent=5 // pred_fallthru
        _
      %p477 = scmp.le.s32.totalorder 2, %s15
      // Predicated region
      $region41: #{tpu_custom_call.1} parent=5 // pred_check
        %p478 = pneg %p477
      $region42: #{tpu_custom_call.1} parent=5 // pred_check_branch
        %480 = sbr.rel (%p478) target = $region44
      $region43: #{tpu_custom_call.1} parent=5 // pred_region
        %s481 = ssub.s32 %s15, 2
        // Predicated region
        $region45: #{tpu_custom_call.1} parent=43 // pred_check
          %p482 = pneg %p128
        $region46: #{tpu_custom_call.1} parent=43 // pred_check_branch
          %484 = sbr.rel (%p482) target = $region48
        $region47: #{tpu_custom_call.1} parent=43 // pred_region
          %s485 = sand.u32 %s113, 1
          %s486 = scalar_lea.sflag [#allocation4], %s485
          %s487 = sand.u32 %s113, 1
          %s488 = smul.addr %s487, 48
          %s489 = scalar_lea.vmem [#allocation5], %s488
          %490 = dma.done %s486, 768
        $region48: #{tpu_custom_call.1} parent=43 // pred_fallthru
          _
      $region44: #{tpu_custom_call.1} parent=5 // pred_fallthru
        _
    $region6: #{tpu_custom_call.1} parent=1 // loop_footer
      %s19 = sadd.s32 1, %s15
    $region7: #{tpu_custom_call.1} parent=1 // loop_footer_branch
      %14 = sbr.rel target = $region3
    $region8: #{tpu_custom_call.1} parent=1 // loop_exit
      _
    %491 = vsyncpa [#allocation3], 1
    %s492 = scalar_lea.sflag [#allocation3], 1
    %493 = vsyncpa %s492, 1
    %494 = vsyncpa [#allocation4], 1
    %s495 = scalar_lea.sflag [#allocation4], 1
    %496 = vsyncpa %s495, 1

</llo_original>
